<compile_context>
chip_gen: v7x
topology: tpu7x:2x2x1
jax: 0.10.0
libtpu: 0.0.40
codegen_flags: <defaults>
</compile_context>

<pallas_src>
import math

import jax
import jax.numpy as jnp
from jax import lax
from jax.experimental import pallas as pl
from jax.experimental.pallas import tpu as pltpu


def _squareplus(x):
    return (x + jnp.sqrt(x * x + 4.0)) * 0.5


def param_proj_kernel(x_ref, wt_ref, b_ref, out_ref):
    # x_ref:   (TILE_N, F)        row-tile of flattened (batch*seq, in_features)
    # wt_ref:  (D_total, F)       concatenated Linear weights, pre-transposed (resident)
    # b_ref:   (D_total, 1)       concatenated Linear biases (resident)
    # out_ref: (D_total, TILE_N)  lane-dense, domain-mapped params
    #
    # Contract both operands over F ("NT" matmul) so the MXU result is already
    # (D_total, TILE_N): no big-tile transpose, and everything downstream
    # (bias add, domain_map, store) is lane-dense.
    z = lax.dot_general(
        wt_ref[...], x_ref[...],
        dimension_numbers=(((1,), (1,)), ((), ())),
        preferred_element_type=jnp.float32,
    )
    z = z + b_ref[...]                      # (D_total, 1) broadcast along lanes

    eps = jnp.finfo(jnp.float32).eps
    sp = _squareplus(z)

    # Row index along the concatenated-args (sublane) axis: 0=df, 1=loc, 2=scale.
    row = lax.broadcasted_iota(jnp.int32, z.shape, dimension=0)
    out = jnp.where(row == 0, 2.0 + sp,
                    jnp.where(row == 2, jnp.maximum(sp, eps), z))
    out_ref[...] = out.astype(out_ref.dtype)


def _vmem_capacity_bytes():
    try:
        return int(pltpu.get_tpu_info().vmem_capacity_bytes)
    except Exception:
        return 64 << 20  # conservative fallback: v7x per-TensorCore VMEM


def _choose_tile_n(n_rows, in_features, d_total, tile_budget_bytes):
    """Largest row tile whose double-buffered pipeline footprint fits the budget."""
    # Per-row VMEM cost of one pipelined step (both buffers):
    #   x tile   (tile_n, F)       f32 : 2 * F * 4 bytes/row
    #   out tile (D_total, tile_n) f32 : D_total pads to the 8-sublane tile -> 2 * 8 * 4 bytes/row
    padded_d = max(8, ((d_total + 7) // 8) * 8)
    bytes_per_row = 2 * in_features * 4 + 2 * padded_d * 4
    max_rows = max(128, (tile_budget_bytes // bytes_per_row) // 128 * 128)
    # Keep >= ~4 grid steps so v7x megacore has work for both TensorCores and
    # the DMA pipeline stays warm; harmless on v5e/v6e.
    quarter = ((pl.cdiv(n_rows, 4) + 127) // 128) * 128
    tile = min(max_rows, max(128, quarter))
    if tile >= n_rows:
        return n_rows  # single step: full-extent block shape is always legal
    return tile        # multiple of 128 -> legal lane dim for the (D_total, tile) output block


def parameter_projection(x, w_cat, b_cat, args_dim):
    """x: (B, T, F) float32. Returns tuple of domain-mapped, squeezed params.

    The in-kernel domain_map is hard-coded for StudentT ordering
    ('df', 'loc', 'scale') with dim 1 each; the key ORDER matters because the
    kernel maps sublane row 0->df, 1->loc, 2->scale.
    """
    # TODO(synk): the generic `domain_map` callable of ParameterProjection is not
    # representable in-kernel; this kernel is specialized to StudentTOutput.
    assert tuple(args_dim.keys()) == ("df", "loc", "scale"), (
        "kernel domain_map is specialized to StudentTOutput arg ordering"
    )
    assert tuple(args_dim.values()) == (1, 1, 1), (
        "kernel domain_map is specialized to StudentTOutput args_dim"
    )

    B, T, F = x.shape
    D_total = w_cat.shape[1]
    assert D_total == sum(args_dim.values())
    N = B * T

    x2d = x.reshape(N, F)
    wt = w_cat.T                       # (D_total, F)
    b2d = b_cat.reshape(D_total, 1)    # (D_total, 1)

    vmem_cap = _vmem_capacity_bytes()
    # Explicit scoped-VMEM limit (defaults are 16/32 MiB); leave headroom for
    # compiler scratch.  ~48 MiB on v7x (64 MiB physical), 64 MiB on v5e/v6e.
    vmem_limit = min(3 * vmem_cap // 4, 64 << 20)
    # Budget for the pipelined tiles themselves (x + output double-buffers).
    tile_budget = min(vmem_limit // 2, 20 << 20)
    tile_n = _choose_tile_n(N, F, D_total, tile_budget)
    grid = (pl.cdiv(N, tile_n),)

    # Remainder tiles (N % tile_n != 0) read OOB x rows and compute on garbage;
    # those stores are masked off, and sqrt(x*x+4) cannot NaN, so this is benign.
    out2d = pl.pallas_call(
        param_proj_kernel,
        out_shape=jax.ShapeDtypeStruct((D_total, N), jnp.float32),
        grid_spec=pltpu.PrefetchScalarGridSpec(
            num_scalar_prefetch=0,
            grid=grid,
            in_specs=[
                pl.BlockSpec((tile_n, F), lambda i: (i, 0)),        # x: tiled over rows
                pl.BlockSpec((D_total, F), lambda i: (0, 0)),       # w^T: resident
                pl.BlockSpec((D_total, 1), lambda i: (0, 0)),       # b: resident
            ],
            out_specs=pl.BlockSpec((D_total, tile_n), lambda i: (0, i)),
        ),
        compiler_params=pltpu.CompilerParams(
            # Row tiles are independent -> megacore sharding on v7x; harmless elsewhere.
            dimension_semantics=("parallel",),
            vmem_limit_bytes=vmem_limit,
        ),
    )(x2d, wt, b2d)

    out3 = out2d.reshape(D_total, B, T)

    # glue: split the concatenated args back out as contiguous row slices and
    # squeeze, matching StudentTOutput.domain_map's (df, loc, scale) return.
    results = []
    off = 0
    for dim in args_dim.values():
        piece = out3[off:off + dim]                 # (dim, B, T)
        piece = piece[0] if dim == 1 else jnp.moveaxis(piece, 0, -1)
        results.append(piece)
        off += dim
    return tuple(results)


def _reference(x, weights, biases):
    """Pure-JAX reference mirroring the PyTorch module."""
    params = [x @ w + b for (w, b) in zip(weights, biases)]
    df, loc, scale = params
    eps = jnp.finfo(jnp.float32).eps
    df = 2.0 + _squareplus(df)
    scale = jnp.maximum(_squareplus(scale), eps)
    return df[..., 0], loc[..., 0], scale[..., 0]


if __name__ == "__main__":
    # Small shapes consistent with the module's forward.
    batch, seq, in_features = 2, 8, 32
    args_dim = {"df": 1, "loc": 1, "scale": 1}
    D_total = sum(args_dim.values())

    key = jax.random.PRNGKey(0)
    kx, *kparams = jax.random.split(key, 1 + 2 * len(args_dim))

    x = jax.random.normal(kx, (batch, seq, in_features), dtype=jnp.float32)

    # Deterministic nn.Linear-style init: U(-1/sqrt(F), 1/sqrt(F)).
    bound = 1.0 / math.sqrt(in_features)
    weights, biases = [], []
    for i, dim in enumerate(args_dim.values()):
        kw, kb = kparams[2 * i], kparams[2 * i + 1]
        w = jax.random.uniform(kw, (in_features, dim), jnp.float32, -bound, bound)
        b = jax.random.uniform(kb, (dim,), jnp.float32, -bound, bound)
        weights.append(w)
        biases.append(b)

    w_cat = jnp.concatenate(weights, axis=1)   # (F, D_total)
    b_cat = jnp.concatenate(biases, axis=0)    # (D_total,)

    out = parameter_projection(x, w_cat, b_cat, args_dim)
    out = jax.block_until_ready(out)

    ref = _reference(x, weights, biases)
    for got, exp in zip(out, ref):
        assert got.shape == exp.shape, (got.shape, exp.shape)
        assert jnp.allclose(got, exp, atol=1e-5, rtol=1e-5)

    print("KERNEL_OK")
</pallas_src>

<mosaic_0001>
module attributes {stable_mosaic.version = 11 : i64} {
  func.func @param_proj_kernel(%arg0: i32, %arg1: memref<16x32xf32, #tpu.memory_space<vmem>>, %arg2: memref<3x32xf32, #tpu.memory_space<vmem>>, %arg3: memref<3x1xf32, #tpu.memory_space<vmem>>, %arg4: memref<3x16xf32, #tpu.memory_space<vmem>>) attributes {dimension_semantics = [#tpu.dimension_semantics<parallel>], iteration_bounds = array<i64: 1>, scalar_prefetch = 0 : i64, scratch_operands = 0 : i64, tpu.core_type = #tpu.core_type<tc>, window_params = [{transform_indices = @transform_0, window_bounds = array<i64: 16, 32>}, {pipeline_mode = #tpu.pipeline_mode<synchronous>, transform_indices = @transform_1, window_bounds = array<i64: 3, 32>}, {pipeline_mode = #tpu.pipeline_mode<synchronous>, transform_indices = @transform_2, window_bounds = array<i64: 3, 1>}, {transform_indices = @transform_3, window_bounds = array<i64: 3, 16>}]} {
    %c0 = arith.constant 0 : index
    %c0_0 = arith.constant 0 : index
    %0 = vector.load %arg2[%c0, %c0_0] : memref<3x32xf32, #tpu.memory_space<vmem>>, vector<3x32xf32>
    %c0_1 = arith.constant 0 : index
    %c0_2 = arith.constant 0 : index
    %1 = vector.load %arg1[%c0_1, %c0_2] : memref<16x32xf32, #tpu.memory_space<vmem>>, vector<16x32xf32>
    %cst = arith.constant dense<0.000000e+00> : vector<3x16xf32>
    %2 = tpu.matmul %0, %1, %cst {dimension_numbers = #tpu.dot_dimension_numbers<[1], [1], [0], [0], [0, 0, 1, 0], [], []>} : vector<3x32xf32>, vector<16x32xf32>, vector<3x16xf32> -> vector<3x16xf32>
    %c0_3 = arith.constant 0 : index
    %c0_4 = arith.constant 0 : index
    %3 = vector.load %arg3[%c0_3, %c0_4] : memref<3x1xf32, #tpu.memory_space<vmem>>, vector<3x1xf32>
    %4 = vector.broadcast %3 : vector<3x1xf32> to vector<3x16xf32>
    %5 = arith.addf %2, %4 : vector<3x16xf32>
    %6 = arith.mulf %5, %5 : vector<3x16xf32>
    %cst_5 = arith.constant 4.000000e+00 : f32
    %7 = vector.broadcast %cst_5 : f32 to vector<3x16xf32>
    %8 = arith.addf %6, %7 : vector<3x16xf32>
    %9 = math.sqrt %8 : vector<3x16xf32>
    %10 = arith.addf %5, %9 : vector<3x16xf32>
    %cst_6 = arith.constant 5.000000e-01 : f32
    %11 = vector.broadcast %cst_6 : f32 to vector<3x16xf32>
    %12 = arith.mulf %10, %11 : vector<3x16xf32>
    %13 = tpu.iota {dimensions = array<i32: 0>} : vector<3x16xi32>
    %c0_i32 = arith.constant 0 : i32
    %14 = vector.broadcast %c0_i32 : i32 to vector<3x16xi32>
    %15 = arith.cmpi eq, %13, %14 : vector<3x16xi32>
    %cst_7 = arith.constant 2.000000e+00 : f32
    %16 = vector.broadcast %cst_7 : f32 to vector<3x16xf32>
    %17 = arith.addf %16, %12 : vector<3x16xf32>
    %c2_i32 = arith.constant 2 : i32
    %18 = vector.broadcast %c2_i32 : i32 to vector<3x16xi32>
    %19 = arith.cmpi eq, %13, %18 : vector<3x16xi32>
    %cst_8 = arith.constant 1.1920929E-7 : f32
    %20 = vector.broadcast %cst_8 : f32 to vector<3x16xf32>
    %21 = arith.maximumf %12, %20 : vector<3x16xf32>
    %22 = arith.select %19, %21, %5 : vector<3x16xi1>, vector<3x16xf32>
    %23 = arith.select %15, %17, %22 : vector<3x16xi1>, vector<3x16xf32>
    %c0_9 = arith.constant 0 : index
    %c0_10 = arith.constant 0 : index
    %24 = vector.load %arg4[%c0_9, %c0_10] : memref<3x16xf32, #tpu.memory_space<vmem>>, vector<3x16xf32>
    tpu.vector_store %arg4[%c0_9, %c0_10], %23 {strides = array<i32>} : memref<3x16xf32, #tpu.memory_space<vmem>>, vector<3x16xf32>,
    return
  }
  func.func @transform_0(%arg0: i32) -> (i32, i32) {
    %c0_i32 = arith.constant 0 : i32
    %c0_i32_0 = arith.constant 0 : i32
    return %arg0, %c0_i32 : i32, i32
  }
  func.func @transform_1(%arg0: i32) -> (i32, i32) {
    %c0_i32 = arith.constant 0 : i32
    %c0_i32_0 = arith.constant 0 : i32
    %c0_i32_1 = arith.constant 0 : i32
    return %c0_i32, %c0_i32_0 : i32, i32
  }
  func.func @transform_2(%arg0: i32) -> (i32, i32) {
    %c0_i32 = arith.constant 0 : i32
    %c0_i32_0 = arith.constant 0 : i32
    %c0_i32_1 = arith.constant 0 : i32
    return %c0_i32, %c0_i32_0 : i32, i32
  }
  func.func @transform_3(%arg0: i32) -> (i32, i32) {
    %c0_i32 = arith.constant 0 : i32
    %c0_i32_0 = arith.constant 0 : i32
    return %c0_i32, %arg0 : i32, i32
  }
}

</mosaic_0001>

<llo_original>
// kernel: tpu_custom_call.1
$region0: #{tpu_custom_call.1}
  #allocation0 [shape = 'u32[]', space=smem, size = 0x4, offset = 0x4, fixed_abs, tag = 'smem constant byte address 0x4 - core index']
  #allocation1 [shape = 'u32[144,128]{1,0:T(1,128)}', space=vmem, size = 0x12000, scoped, tag = 'internal scratch']
  %s0 = inlined_call_operand.hbm [shape: f32[16,32], index: 0, kind: input, shape index: {}]
  %s1 = inlined_call_operand.vmem [shape: f32[3,32], index: 1, kind: input, shape index: {}]
  %s2 = inlined_call_operand.vmem [shape: f32[3,1], index: 2, kind: input, shape index: {}]
  %s3 = inlined_call_operand.hbm [shape: f32[3,16], index: 3, kind: output, shape index: {}]
  %s4 = sld [smem:[#allocation0]]
  $region26: #{tpu_custom_call.1} parent=0
    _
  %s6 = ssub.s32 1, %s4
  %s7 = scalar_select 0, %s6, %s4
  $region1: #{tpu_custom_call.1} parent=0
    #allocation2 [shape = 'u8[8192]{0}', space=vmem, size = 0x2000, scoped, tag = 'input window, operand 0, single buffered']
    #allocation3 [shape = 's32[1]{0}', space=sflag, size = 0x4, scoped, tag = 'scoped memory for tpu_custom_call.1']
    #allocation4 [shape = 's32[1]{0}', space=sflag, size = 0x4, scoped, tag = 'scoped memory for tpu_custom_call.1']
    #allocation5 [shape = 'u8[2048]{0}', space=vmem, size = 0x800, scoped, tag = 'output window, operand 0, single buffered']
    %8 = vsyncpa [#allocation3], 0
    %9 = vsyncpa [#allocation4], 0
    // Predicated region
    $region2: #{tpu_custom_call.1} parent=1 // pred_check
      _
    $region3: #{tpu_custom_call.1} parent=1 // pred_check_branch
      %11 = sbr.rel (0) target = $region5
    $region4: #{tpu_custom_call.1} parent=1 // pred_region
      %s13 = ssub.s32 256, 256
      %14 = vsyncadd [#allocation3], %s13
      %s15 = sshll.u32 [#allocation2], 4
      %s16 = int_to_ptr.vmem [resolvable:$true] %s15
      %21 = dma.hbm_to_vmem [thread:$0]  %s0, 256, %s16, [#allocation3], 128, 128, 8
    $region5: #{tpu_custom_call.1} parent=1 // pred_fallthru
      _
    // Predicated region
    $region6: #{tpu_custom_call.1} parent=1 // pred_check
      _
    $region7: #{tpu_custom_call.1} parent=1 // pred_check_branch
      %23 = sbr.rel (0) target = $region9
    $region8: #{tpu_custom_call.1} parent=1 // pred_region
      _
    $region9: #{tpu_custom_call.1} parent=1 // pred_fallthru
      _
    // Predicated region
    $region10: #{tpu_custom_call.1} parent=1 // pred_check
      _
    $region11: #{tpu_custom_call.1} parent=1 // pred_check_branch
      %25 = sbr.rel (0) target = $region13
    $region12: #{tpu_custom_call.1} parent=1 // pred_region
      _
    $region13: #{tpu_custom_call.1} parent=1 // pred_fallthru
      _
    // Predicated region
    $region14: #{tpu_custom_call.1} parent=1 // pred_check
      _
    $region15: #{tpu_custom_call.1} parent=1 // pred_check_branch
      %27 = sbr.rel (0) target = $region17
    $region16: #{tpu_custom_call.1} parent=1 // pred_region
      %28 = dma.done [#allocation3], 256
    $region17: #{tpu_custom_call.1} parent=1 // pred_fallthru
      _
    %v29 = vld [vmem:[%s1] sm:$0x7]
    %v30 = vld [vmem:[#allocation2] sm:$0xff]
    %v31 = vld [vmem:[#allocation2 + $0x8] sm:$0xff]
    %v32 = vld [vmem:[%s2] sm:$0x7]
    %34 = vset.pattern.permute.xlu0 0
    %35 = vperm.xlu0 %34, %v32
    %v36 = vpop.permute.xlu0 %35
    %vm38 = vcmask 261120
    %v40 = vsel %vm38, %v29, 0
    %v43 = vsel %vm38, %v30, 0
    %v46 = vsel %vm38, %v31, 0
    %48 = vmatprep.subr.mxu0 0.0
    %49 = vmatpush1.xpose.msra.mxu0 %v43
    %50 = vmatprep.subr.mxu0 0.0
    %51 = vmatpush1.xpose.msra.mxu0 %v46
    %52 = vmatprep.subr.mxu0 0.0
    %53 = vmatpush1.xpose.msra.mxu0 0.0
    %54 = vmatprep.subr.mxu0 0.0
    %55 = vmatpush1.xpose.msra.mxu0 0.0
    %56 = vmatprep.subr.mxu0 0.0
    %57 = vmatpush1.xpose.msra.mxu0 0.0
    %58 = vmatprep.subr.mxu0 0.0
    %59 = vmatpush1.xpose.msra.mxu0 0.0
    %60 = vmatprep.subr.mxu0 0.0
    %61 = vmatpush1.xpose.msra.mxu0 0.0
    %62 = vmatprep.subr.mxu0 0.0
    %63 = vmatpush1.xpose.msra.mxu0 0.0
    %64 = vmatprep.subr.mxu0 0.0
    %65 = vmatpush1.xpose.msra.mxu0 0.0
    %66 = vmatprep.subr.mxu0 0.0
    %67 = vmatpush1.xpose.msra.mxu0 0.0
    %68 = vmatprep.subr.mxu0 0.0
    %69 = vmatpush1.xpose.msra.mxu0 0.0
    %70 = vmatprep.subr.mxu0 0.0
    %71 = vmatpush1.xpose.msra.mxu0 0.0
    %72 = vmatprep.subr.mxu0 0.0
    %73 = vmatpush1.xpose.msra.mxu0 0.0
    %74 = vmatprep.subr.mxu0 0.0
    %75 = vmatpush1.xpose.msra.mxu0 0.0
    %76 = vmatprep.subr.mxu0 0.0
    %77 = vmatpush1.xpose.msra.mxu0 0.0
    %78 = vmatprep.subr.mxu0 0.0
    %79 = vmatpush1.xpose.msra.mxu0 0.0
    %80 = vmatprep.subr.mxu0 0.0
    %81 = vmatpush1.xpose.msra.mxu0 0.0
    %82 = vmatprep.subr.mxu0 0.0
    %83 = vmatpush1.xpose.msra.mxu0 0.0
    %84 = vmatprep.subr.mxu0 0.0
    %85 = vmatpush1.xpose.msra.mxu0 0.0
    %86 = vmatprep.subr.mxu0 0.0
    %87 = vmatpush1.xpose.msra.mxu0 0.0
    %88 = vmatprep.subr.mxu0 0.0
    %89 = vmatpush1.xpose.msra.mxu0 0.0
    %90 = vmatprep.subr.mxu0 0.0
    %91 = vmatpush1.xpose.msra.mxu0 0.0
    %92 = vmatprep.subr.mxu0 0.0
    %93 = vmatpush1.xpose.msra.mxu0 0.0
    %94 = vmatprep.subr.mxu0 0.0
    %95 = vmatpush1.xpose.msra.mxu0 0.0
    %96 = vmatprep.subr.mxu0 0.0
    %97 = vmatpush1.xpose.msra.mxu0 0.0
    %98 = vmatprep.subr.mxu0 0.0
    %99 = vmatpush1.xpose.msra.mxu0 0.0
    %100 = vmatprep.subr.mxu0 0.0
    %101 = vmatpush1.xpose.msra.mxu0 0.0
    %102 = vmatprep.subr.mxu0 0.0
    %103 = vmatpush1.xpose.msra.mxu0 0.0
    %104 = vmatprep.subr.mxu0 0.0
    %105 = vmatpush1.xpose.msra.mxu0 0.0
    %106 = vmatprep.subr.mxu0 0.0
    %107 = vmatpush1.xpose.msra.mxu0 0.0
    %108 = vmatprep.subr.mxu0 0.0
    %109 = vmatpush1.xpose.msra.mxu0 0.0
    %110 = vmatprep.subr.mxu0 0.0
    %111 = vmatpush1.xpose.msra.mxu0 0.0
    %112 = vmatprep.mubr.f32.mxu0 0.0
    %113 = vmatmul.mubr.f32.gmra.mrb[0].mxu0 %v40
    %v114 = vpop.f32.mrb[0].mxu0
    %v115 = vadd.f32 %v36, %v114
    %v116 = vpop.f32.mrb[0].mxu0
    %117 = vdwg.mxu0
    %v118 = vmul.f32 %v115, %v115
    %v119 = vadd.f32 %v118, 4.0
    %v120 = vrsqrt.pop %v119
    %v121 = vmul.f32 %v119, %v120
    %vm122 = vcmp.eq.f32.partialorder %v119, inf
    %v123 = vsel %vm122, %v119, %v121
    %vm124 = vcmp.eq.f32.partialorder %v119, 0.0
    %v125 = vand.u32 %v119, 2147483648
    %v126 = vsel %vm124, %v125, %v123
    %v127 = vadd.f32 %v115, %v126
    %v128 = vmul.f32 %v127, 0.5
    %v129 = vlaneseq
    %v130 = vshrl.u32 %v129, 7
    %vm131 = vcmp.eq.s32.totalorder %v130, 0
    %v132 = vadd.f32 %v128, 2.0
    %vm133 = vcmp.eq.s32.totalorder %v130, 2
    %v134 = vmax.f32 %v128, 1.1920929e-07
    %v135 = vsel %vm133, %v134, %v115
    %v136 = vsel %vm131, %v132, %v135
    %vm137 = vcmask 124928
    %138 = vst.msk [vmem:[#allocation5] sm:$0x7] %vm137, %v136
    // Predicated region
    $region18: #{tpu_custom_call.1} parent=1 // pred_check
      _
    $region19: #{tpu_custom_call.1} parent=1 // pred_check_branch
      %140 = sbr.rel (0) target = $region21
    $region20: #{tpu_custom_call.1} parent=1 // pred_region
      %s142 = ssub.s32 64, 64
      %143 = vsyncadd [#allocation4], %s142
      %s145 = sshll.u32 [#allocation5], 4
      %s146 = int_to_ptr.vmem [resolvable:$true] %s145
      %148 = dma.vmem_to_hbm [thread:$0]  %s146, 64, %s3, [#allocation4]
    $region21: #{tpu_custom_call.1} parent=1 // pred_fallthru
      _
    // Predicated region
    $region22: #{tpu_custom_call.1} parent=1 // pred_check
      _
    $region23: #{tpu_custom_call.1} parent=1 // pred_check_branch
      %150 = sbr.rel (0) target = $region25
    $region24: #{tpu_custom_call.1} parent=1 // pred_region
      %151 = dma.done [#allocation4], 64
    $region25: #{tpu_custom_call.1} parent=1 // pred_fallthru
      _
    %152 = vsyncpa [#allocation3], 1
    %153 = vsyncpa [#allocation4], 1

</llo_original>
